<compile_context>
chip_gen: v7x
topology: tpu7x:2x2x1
jax: 0.10.0
libtpu: 0.0.40
codegen_flags: <defaults>
</compile_context>

<pallas_src>
import functools

import jax
import jax.numpy as jnp
from jax.experimental import pallas as pl
from jax.experimental.pallas import tpu as pltpu

# ----------------------------------------------------------------------------
# Synthetic constants standing in for nle_toolbox's glyphlut / glyph_group.
# ----------------------------------------------------------------------------
MAX_GLYPH = 64          # number of distinct glyph ids (lut length)
MAX_ENTITY = 32         # entity vocab; padding idx == MAX_ENTITY
GROUP_MAX = 8           # group vocab;  padding idx == GROUP_MAX
EMBEDDING_DIM = 32

MAX_TILE_ROWS = 1024    # output rows per grid step (PACK=4 -> 4096 tokens)
MIN_TILE_ROWS = 256     # below this, don't bother splitting into >= 2 steps


def _round_up(x, m):
    return ((x + m - 1) // m) * m


# ----------------------------------------------------------------------------
# Pallas kernel: packed one-hot gather from the fused block-diagonal table.
#   idx_ref : (tile_rows, pack) int32, combined indices  p * v_seg + glyph_id
#             (-1 for padding / invalid tokens -> all-zero output segment)
#   tab_ref : (pack * v_seg, pack * D) f32, block-diagonal replicated table
#   out_ref : (tile_rows, pack * D) f32  (lane-dense: pack*D == 128 for D=32)
# ----------------------------------------------------------------------------
def _glyph_embed_kernel(idx_ref, tab_ref, out_ref, *, pack, v_seg):
    rows = out_ref.shape[0]
    pw = tab_ref.shape[0]                       # pack * v_seg
    idx = idx_ref[...]                          # (rows, pack) int32

    # Fast path: segments tile 128-lane columns exactly -> each packed index
    # is compared only against its own column's iota (fewer VPU ops, no wide
    # OR chain); the chunks are concatenated at 128-lane boundaries (free).
    use_cols = (v_seg <= 128) and (128 % v_seg == 0) and (pw % 128 == 0)
    if use_cols:
        segs_per_col = 128 // v_seg
        n_cols = pw // 128
        base = jax.lax.broadcasted_iota(jnp.int32, (rows, 128), 1)
        chunks = []
        for c in range(n_cols):
            col_c = base + c * 128
            p0 = c * segs_per_col
            hot_c = idx[:, p0:p0 + 1] == col_c
            for s in range(1, segs_per_col):
                hot_c = jnp.logical_or(hot_c,
                                       idx[:, p0 + s:p0 + s + 1] == col_c)
            chunks.append(hot_c.astype(jnp.float32))
        hot = chunks[0] if n_cols == 1 else jnp.concatenate(chunks, axis=1)
    else:
        # Generic fallback: combined index vs. a full-width iota, OR over
        # the pack segments (correct for any v_seg).
        col = jax.lax.broadcasted_iota(jnp.int32, (rows, pw), 1)
        acc = idx[:, 0:1] == col
        for p in range(1, pack):
            acc = jnp.logical_or(acc, idx[:, p:p + 1] == col)
        hot = acc.astype(jnp.float32)

    # (rows, pack*v_seg) @ (pack*v_seg, pack*D) -> (rows, pack*D) on the MXU.
    out_ref[...] = jnp.dot(hot, tab_ref[...],
                           preferred_element_type=jnp.float32)


@jax.jit
def glyph_embedding_forward(glyphs, entity_lut, group_lut, entity_emb,
                            group_emb):
    """Pallas-backed equivalent of GlyphEmbedding.forward.

    glyphs:      int array, arbitrary shape (...)
    entity_lut:  (MAX_GLYPH,) int32  -> entity ids in [0, MAX_ENTITY]
    group_lut:   (MAX_GLYPH,) int32  -> group ids  in [0, GROUP_MAX]
    entity_emb:  (MAX_ENTITY + 1, D) float32, row MAX_ENTITY is zeros
    group_emb:   (GROUP_MAX + 1, D) float32, row GROUP_MAX is zeros
    returns:     (..., D) float32
    """
    orig_shape = glyphs.shape
    d = entity_emb.shape[1]
    n_glyph = entity_lut.shape[0]

    # ---- Fuse the two embedding tables through their LUTs (tiny, per call).
    fused = (jnp.take(entity_emb, entity_lut, axis=0)
             + jnp.take(group_emb, group_lut, axis=0)).astype(jnp.float32)

    # Per-segment stride (sublane aligned).  No explicit pad row: invalid /
    # padding tokens use the -1 sentinel which matches no one-hot column.
    v_seg = _round_up(n_glyph, 8)
    if v_seg > n_glyph:
        fused = jnp.concatenate(
            [fused, jnp.zeros((v_seg - n_glyph, d), jnp.float32)], axis=0)

    # ---- How many tokens fit in one 128-lane output row.
    pack = 128 // d if (d <= 128 and 128 % d == 0) else 1

    # Block-diagonal replicated table (pack*v_seg, pack*d).
    if pack > 1:
        eye = jnp.eye(pack, dtype=jnp.float32)
        tab = jnp.einsum('pq,vd->pvqd', eye, fused).reshape(
            pack * v_seg, pack * d)
    else:
        tab = fused

    # ---- Flatten + pad the token axis; pick the tile size.
    g = glyphs.astype(jnp.int32).reshape(-1)
    n = g.shape[0]
    if n == 0:
        return jnp.zeros((*orig_shape, d), jnp.float32)

    rows = _round_up(pl.cdiv(n, pack), 8)
    if rows <= MIN_TILE_ROWS:
        tile_rows = rows                                  # single small step
    else:
        # Cap the tile; keep >= 2 grid steps so both v7x TCs get work.
        tile_rows = min(MAX_TILE_ROWS, _round_up(pl.cdiv(rows, 2), 8))
    rows_pad = _round_up(rows, tile_rows)
    n_pad = rows_pad * pack

    # Combined indices: p * v_seg + glyph_id; padding / out-of-range -> -1.
    g_pad = jnp.pad(g, (0, n_pad - n),
                    constant_values=-1).reshape(rows_pad, pack)
    off = (jnp.arange(pack, dtype=jnp.int32) * v_seg)[None, :]
    valid = (g_pad >= 0) & (g_pad < n_glyph)
    comb = jnp.where(valid, g_pad + off, jnp.int32(-1))

    out = pl.pallas_call(
        functools.partial(_glyph_embed_kernel, pack=pack, v_seg=v_seg),
        out_shape=jax.ShapeDtypeStruct((rows_pad, pack * d), jnp.float32),
        grid_spec=pltpu.PrefetchScalarGridSpec(
            num_scalar_prefetch=0,
            grid=(rows_pad // tile_rows,),
            in_specs=[
                pl.BlockSpec((tile_rows, pack), lambda i: (i, 0)),   # indices
                pl.BlockSpec((pack * v_seg, pack * d),
                             lambda i: (0, 0)),                      # table
            ],
            out_specs=pl.BlockSpec((tile_rows, pack * d), lambda i: (i, 0)),
        ),
        compiler_params=pltpu.CompilerParams(
            dimension_semantics=("parallel",)),
    )(comb, tab)

    # (rows_pad, pack*D) -> (rows_pad*pack, D): row r, segment p == token
    # r*pack + p, so a plain (contiguous) reshape restores token order.
    return out.reshape(rows_pad * pack, d)[:n].reshape(*orig_shape, d)


# ----------------------------------------------------------------------------
# Deterministic parameter construction (synthetic stand-in for the module).
# ----------------------------------------------------------------------------
def make_params(key, embedding_dim=EMBEDDING_DIM):
    k_lut_e, k_lut_g, k_emb_e, k_emb_g = jax.random.split(key, 4)

    entity_lut = jax.random.randint(
        k_lut_e, (MAX_GLYPH,), 0, MAX_ENTITY + 1, dtype=jnp.int32)
    group_lut = jax.random.randint(
        k_lut_g, (MAX_GLYPH,), 0, GROUP_MAX + 1, dtype=jnp.int32)

    entity_emb = jax.random.normal(
        k_emb_e, (MAX_ENTITY + 1, embedding_dim), dtype=jnp.float32)
    entity_emb = entity_emb.at[MAX_ENTITY].set(0.0)        # padding_idx row
    group_emb = jax.random.normal(
        k_emb_g, (GROUP_MAX + 1, embedding_dim), dtype=jnp.float32)
    group_emb = group_emb.at[GROUP_MAX].set(0.0)           # padding_idx row

    return entity_lut, group_lut, entity_emb, group_emb


def reference_forward(glyphs, entity_lut, group_lut, entity_emb, group_emb):
    g = glyphs.astype(jnp.int32)
    ent = jnp.take(entity_emb, jnp.take(entity_lut, g, axis=0), axis=0)
    grp = jnp.take(group_emb, jnp.take(group_lut, g, axis=0), axis=0)
    return ent + grp


if __name__ == "__main__":
    key = jax.random.PRNGKey(0)
    k_params, k_g1, k_g2 = jax.random.split(key, 3)

    entity_lut, group_lut, entity_emb, group_emb = make_params(k_params)

    # Small NetHack-like glyph screens (int glyph ids).
    glyphs_small = jax.random.randint(
        k_g1, (2, 8, 16), 0, MAX_GLYPH, dtype=jnp.int32)      # 1-step grid
    glyphs_big = jax.random.randint(
        k_g2, (4, 21, 79), 0, MAX_GLYPH, dtype=jnp.int32)     # 2-step grid

    for glyphs in (glyphs_small, glyphs_big):
        out = glyph_embedding_forward(
            glyphs, entity_lut, group_lut, entity_emb, group_emb)
        out = jax.block_until_ready(out)
        ref = reference_forward(
            glyphs, entity_lut, group_lut, entity_emb, group_emb)
        assert out.shape == (*glyphs.shape, EMBEDDING_DIM), out.shape
        assert jnp.allclose(out, ref, atol=1e-5, rtol=1e-5), \
            "mismatch vs reference"

    print("KERNEL_OK")
</pallas_src>

<mosaic_0001>
module attributes {stable_mosaic.version = 11 : i64} {
  func.func @_glyph_embed_kernel(%arg0: i32, %arg1: memref<64x4xi32, #tpu.memory_space<vmem>>, %arg2: memref<256x128xf32, #tpu.memory_space<vmem>>, %arg3: memref<64x128xf32, #tpu.memory_space<vmem>>) attributes {dimension_semantics = [#tpu.dimension_semantics<parallel>], iteration_bounds = array<i64: 1>, scalar_prefetch = 0 : i64, scratch_operands = 0 : i64, tpu.core_type = #tpu.core_type<tc>, window_params = [{transform_indices = @transform_0, window_bounds = array<i64: 64, 4>}, {pipeline_mode = #tpu.pipeline_mode<synchronous>, transform_indices = @transform_1, window_bounds = array<i64: 256, 128>}, {transform_indices = @transform_2, window_bounds = array<i64: 64, 128>}]} {
    %c0 = arith.constant 0 : index
    %c0_0 = arith.constant 0 : index
    %0 = vector.load %arg1[%c0, %c0_0] : memref<64x4xi32, #tpu.memory_space<vmem>>, vector<64x4xi32>
    %1 = tpu.iota {dimensions = array<i32: 1>} : vector<64x128xi32>
    %c0_i32 = arith.constant 0 : i32
    %2 = vector.broadcast %c0_i32 : i32 to vector<64x128xi32>
    %3 = arith.addi %1, %2 : vector<64x128xi32>
    %4 = vector.extract_strided_slice %0 {offsets = [0, 0], sizes = [64, 1], strides = [1, 1]} : vector<64x4xi32> to vector<64x1xi32>
    %5 = vector.broadcast %4 : vector<64x1xi32> to vector<64x128xi32>
    %6 = arith.cmpi eq, %5, %3 : vector<64x128xi32>
    %7 = vector.extract_strided_slice %0 {offsets = [0, 1], sizes = [64, 1], strides = [1, 1]} : vector<64x4xi32> to vector<64x1xi32>
    %8 = vector.broadcast %7 : vector<64x1xi32> to vector<64x128xi32>
    %9 = arith.cmpi eq, %8, %3 : vector<64x128xi32>
    %10 = arith.ori %6, %9 : vector<64x128xi1>
    %11 = arith.extui %10 : vector<64x128xi1> to vector<64x128xi32>
    %12 = arith.sitofp %11 : vector<64x128xi32> to vector<64x128xf32>
    %c128_i32 = arith.constant 128 : i32
    %13 = vector.broadcast %c128_i32 : i32 to vector<64x128xi32>
    %14 = arith.addi %1, %13 : vector<64x128xi32>
    %15 = vector.extract_strided_slice %0 {offsets = [0, 2], sizes = [64, 1], strides = [1, 1]} : vector<64x4xi32> to vector<64x1xi32>
    %16 = vector.broadcast %15 : vector<64x1xi32> to vector<64x128xi32>
    %17 = arith.cmpi eq, %16, %14 : vector<64x128xi32>
    %18 = vector.extract_strided_slice %0 {offsets = [0, 3], sizes = [64, 1], strides = [1, 1]} : vector<64x4xi32> to vector<64x1xi32>
    %19 = vector.broadcast %18 : vector<64x1xi32> to vector<64x128xi32>
    %20 = arith.cmpi eq, %19, %14 : vector<64x128xi32>
    %21 = arith.ori %17, %20 : vector<64x128xi1>
    %22 = arith.extui %21 : vector<64x128xi1> to vector<64x128xi32>
    %23 = arith.sitofp %22 : vector<64x128xi32> to vector<64x128xf32>
    %24 = tpu.concatenate %12, %23 in 1 : vector<64x128xf32>, vector<64x128xf32> -> vector<64x256xf32>
    %c0_1 = arith.constant 0 : index
    %c0_2 = arith.constant 0 : index
    %25 = vector.load %arg2[%c0_1, %c0_2] : memref<256x128xf32, #tpu.memory_space<vmem>>, vector<256x128xf32>
    %cst = arith.constant dense<0.000000e+00> : vector<64x128xf32>
    %26 = tpu.matmul %24, %25, %cst {dimension_numbers = #tpu.dot_dimension_numbers<[1], [0], [0], [1], [0, 0, 1, 1], [], []>} : vector<64x256xf32>, vector<256x128xf32>, vector<64x128xf32> -> vector<64x128xf32>
    %c0_3 = arith.constant 0 : index
    %c0_4 = arith.constant 0 : index
    %27 = vector.load %arg3[%c0_3, %c0_4] : memref<64x128xf32, #tpu.memory_space<vmem>>, vector<64x128xf32>
    tpu.vector_store %arg3[%c0_3, %c0_4], %26 {strides = array<i32>} : memref<64x128xf32, #tpu.memory_space<vmem>>, vector<64x128xf32>,
    return
  }
  func.func @transform_0(%arg0: i32) -> (i32, i32) {
    %c0_i32 = arith.constant 0 : i32
    %c0_i32_0 = arith.constant 0 : i32
    return %arg0, %c0_i32 : i32, i32
  }
  func.func @transform_1(%arg0: i32) -> (i32, i32) {
    %c0_i32 = arith.constant 0 : i32
    %c0_i32_0 = arith.constant 0 : i32
    %c0_i32_1 = arith.constant 0 : i32
    return %c0_i32, %c0_i32_0 : i32, i32
  }
  func.func @transform_2(%arg0: i32) -> (i32, i32) {
    %c0_i32 = arith.constant 0 : i32
    %c0_i32_0 = arith.constant 0 : i32
    return %arg0, %c0_i32 : i32, i32
  }
}

</mosaic_0001>

<llo_original>
// kernel: glyph_embedding_forward.1
$region0: #{glyph_embedding_forward.1}
  #allocation0 [shape = 'u32[]', space=smem, size = 0x4, offset = 0x4, fixed_abs, tag = 'smem constant byte address 0x4 - core index']
  #allocation1 [shape = 'u32[144,128]{1,0:T(1,128)}', space=vmem, size = 0x12000, scoped, tag = 'internal scratch']
  %s0 = inlined_call_operand.vmem [shape: s32[64,4], index: 0, kind: input, shape index: {}]
  %s1 = inlined_call_operand.vmem [shape: f32[256,128], index: 1, kind: input, shape index: {}]
  %s2 = inlined_call_operand.vmem [shape: f32[64,128], index: 2, kind: output, shape index: {}]
  %s3 = sld [smem:[#allocation0]]
  $region18: #{glyph_embedding_forward.1} parent=0
    _
  %s5 = ssub.s32 1, %s3
  %s6 = scalar_select 0, %s5, %s3
  // Predicated region
  $region2: #{glyph_embedding_forward.1} parent=0 // pred_check
    _
  $region3: #{glyph_embedding_forward.1} parent=0 // pred_check_branch
    %8 = sbr.rel (0) target = $region5
  $region4: #{glyph_embedding_forward.1} parent=0 // pred_region
    _
  $region5: #{glyph_embedding_forward.1} parent=0 // pred_fallthru
    _
  // Predicated region
  $region6: #{glyph_embedding_forward.1} parent=0 // pred_check
    _
  $region7: #{glyph_embedding_forward.1} parent=0 // pred_check_branch
    %10 = sbr.rel (0) target = $region9
  $region8: #{glyph_embedding_forward.1} parent=0 // pred_region
    _
  $region9: #{glyph_embedding_forward.1} parent=0 // pred_fallthru
    _
  %v11 = vld [vmem:[%s0] sm:$0xff]
  %v12 = vld [vmem:[%s0 + $0x8] sm:$0xff]
  %v13 = vld [vmem:[%s0 + $0x10] sm:$0xff]
  %v14 = vld [vmem:[%s0 + $0x18] sm:$0xff]
  %v15 = vld [vmem:[%s0 + $0x20] sm:$0xff]
  %v16 = vld [vmem:[%s0 + $0x28] sm:$0xff]
  %v17 = vld [vmem:[%s0 + $0x30] sm:$0xff]
  %v18 = vld [vmem:[%s0 + $0x38] sm:$0xff]
  %v19 = vlaneseq
  %v20 = vand.u32 %v19, 127
  %21 = vset.pattern.permute.xlu0 0
  %22 = vperm.xlu0 %21, %v11
  %v23 = vpop.permute.xlu0 %22
  %24 = vset.pattern.permute.xlu0 0
  %25 = vperm.xlu0 %24, %v12
  %v26 = vpop.permute.xlu0 %25
  %27 = vset.pattern.permute.xlu0 0
  %28 = vperm.xlu0 %27, %v13
  %v29 = vpop.permute.xlu0 %28
  %30 = vset.pattern.permute.xlu0 0
  %31 = vperm.xlu0 %30, %v14
  %v32 = vpop.permute.xlu0 %31
  %33 = vset.pattern.permute.xlu0 0
  %34 = vperm.xlu0 %33, %v15
  %v35 = vpop.permute.xlu0 %34
  %36 = vset.pattern.permute.xlu0 0
  %37 = vperm.xlu0 %36, %v16
  %v38 = vpop.permute.xlu0 %37
  %39 = vset.pattern.permute.xlu0 0
  %40 = vperm.xlu0 %39, %v17
  %v41 = vpop.permute.xlu0 %40
  %42 = vset.pattern.permute.xlu0 0
  %43 = vperm.xlu0 %42, %v18
  %v44 = vpop.permute.xlu0 %43
  %vm45 = vcmp.eq.s32.totalorder %v23, %v20
  %vm46 = vcmp.eq.s32.totalorder %v26, %v20
  %vm47 = vcmp.eq.s32.totalorder %v29, %v20
  %vm48 = vcmp.eq.s32.totalorder %v32, %v20
  %vm49 = vcmp.eq.s32.totalorder %v35, %v20
  %vm50 = vcmp.eq.s32.totalorder %v38, %v20
  %vm51 = vcmp.eq.s32.totalorder %v41, %v20
  %vm52 = vcmp.eq.s32.totalorder %v44, %v20
  %53 = vset.pattern.permute.xlu0 1
  %54 = vperm.xlu0 %53, %v11
  %v55 = vpop.permute.xlu0 %54
  %56 = vset.pattern.permute.xlu0 1
  %57 = vperm.xlu0 %56, %v12
  %v58 = vpop.permute.xlu0 %57
  %59 = vset.pattern.permute.xlu0 1
  %60 = vperm.xlu0 %59, %v13
  %v61 = vpop.permute.xlu0 %60
  %62 = vset.pattern.permute.xlu0 1
  %63 = vperm.xlu0 %62, %v14
  %v64 = vpop.permute.xlu0 %63
  %65 = vset.pattern.permute.xlu0 1
  %66 = vperm.xlu0 %65, %v15
  %v67 = vpop.permute.xlu0 %66
  %68 = vset.pattern.permute.xlu0 1
  %69 = vperm.xlu0 %68, %v16
  %v70 = vpop.permute.xlu0 %69
  %71 = vset.pattern.permute.xlu0 1
  %72 = vperm.xlu0 %71, %v17
  %v73 = vpop.permute.xlu0 %72
  %74 = vset.pattern.permute.xlu0 1
  %75 = vperm.xlu0 %74, %v18
  %v76 = vpop.permute.xlu0 %75
  %vm77 = vcmp.eq.s32.totalorder %v55, %v20
  %vm78 = vcmp.eq.s32.totalorder %v58, %v20
  %vm79 = vcmp.eq.s32.totalorder %v61, %v20
  %vm80 = vcmp.eq.s32.totalorder %v64, %v20
  %vm81 = vcmp.eq.s32.totalorder %v67, %v20
  %vm82 = vcmp.eq.s32.totalorder %v70, %v20
  %vm83 = vcmp.eq.s32.totalorder %v73, %v20
  %vm84 = vcmp.eq.s32.totalorder %v76, %v20
  %vm85 = vmor %vm45, %vm77
  %vm86 = vmor %vm46, %vm78
  %vm87 = vmor %vm47, %vm79
  %vm88 = vmor %vm48, %vm80
  %vm89 = vmor %vm49, %vm81
  %vm90 = vmor %vm50, %vm82
  %vm91 = vmor %vm51, %vm83
  %vm92 = vmor %vm52, %vm84
  %v93 = vsel %vm85, 1, 0
  %v94 = vsel %vm86, 1, 0
  %v95 = vsel %vm87, 1, 0
  %v96 = vsel %vm88, 1, 0
  %v97 = vsel %vm89, 1, 0
  %v98 = vsel %vm90, 1, 0
  %v99 = vsel %vm91, 1, 0
  %v100 = vsel %vm92, 1, 0
  %v101 = vcvt.s32.f32 %v93
  %v102 = vcvt.s32.f32 %v94
  %v103 = vcvt.s32.f32 %v95
  %v104 = vcvt.s32.f32 %v96
  %v105 = vcvt.s32.f32 %v97
  %v106 = vcvt.s32.f32 %v98
  %v107 = vcvt.s32.f32 %v99
  %v108 = vcvt.s32.f32 %v100
  %v109 = vadd.s32 %v20, 128
  %110 = vset.pattern.permute.xlu0 2
  %111 = vperm.xlu0 %110, %v11
  %v112 = vpop.permute.xlu0 %111
  %113 = vset.pattern.permute.xlu0 2
  %114 = vperm.xlu0 %113, %v12
  %v115 = vpop.permute.xlu0 %114
  %116 = vset.pattern.permute.xlu0 2
  %117 = vperm.xlu0 %116, %v13
  %v118 = vpop.permute.xlu0 %117
  %119 = vset.pattern.permute.xlu0 2
  %120 = vperm.xlu0 %119, %v14
  %v121 = vpop.permute.xlu0 %120
  %122 = vset.pattern.permute.xlu0 2
  %123 = vperm.xlu0 %122, %v15
  %v124 = vpop.permute.xlu0 %123
  %125 = vset.pattern.permute.xlu0 2
  %126 = vperm.xlu0 %125, %v16
  %v127 = vpop.permute.xlu0 %126
  %128 = vset.pattern.permute.xlu0 2
  %129 = vperm.xlu0 %128, %v17
  %v130 = vpop.permute.xlu0 %129
  %131 = vset.pattern.permute.xlu0 2
  %132 = vperm.xlu0 %131, %v18
  %v133 = vpop.permute.xlu0 %132
  %vm134 = vcmp.eq.s32.totalorder %v112, %v109
  %vm135 = vcmp.eq.s32.totalorder %v115, %v109
  %vm136 = vcmp.eq.s32.totalorder %v118, %v109
  %vm137 = vcmp.eq.s32.totalorder %v121, %v109
  %vm138 = vcmp.eq.s32.totalorder %v124, %v109
  %vm139 = vcmp.eq.s32.totalorder %v127, %v109
  %vm140 = vcmp.eq.s32.totalorder %v130, %v109
  %vm141 = vcmp.eq.s32.totalorder %v133, %v109
  %142 = vset.pattern.permute.xlu0 3
  %143 = vperm.xlu0 %142, %v11
  %v144 = vpop.permute.xlu0 %143
  %145 = vset.pattern.permute.xlu0 3
  %146 = vperm.xlu0 %145, %v12
  %v147 = vpop.permute.xlu0 %146
  %148 = vset.pattern.permute.xlu0 3
  %149 = vperm.xlu0 %148, %v13
  %v150 = vpop.permute.xlu0 %149
  %151 = vset.pattern.permute.xlu0 3
  %152 = vperm.xlu0 %151, %v14
  %v153 = vpop.permute.xlu0 %152
  %154 = vset.pattern.permute.xlu0 3
  %155 = vperm.xlu0 %154, %v15
  %v156 = vpop.permute.xlu0 %155
  %157 = vset.pattern.permute.xlu0 3
  %158 = vperm.xlu0 %157, %v16
  %v159 = vpop.permute.xlu0 %158
  %160 = vset.pattern.permute.xlu0 3
  %161 = vperm.xlu0 %160, %v17
  %v162 = vpop.permute.xlu0 %161
  %163 = vset.pattern.permute.xlu0 3
  %164 = vperm.xlu0 %163, %v18
  %v165 = vpop.permute.xlu0 %164
  %vm166 = vcmp.eq.s32.totalorder %v144, %v109
  %vm167 = vcmp.eq.s32.totalorder %v147, %v109
  %vm168 = vcmp.eq.s32.totalorder %v150, %v109
  %vm169 = vcmp.eq.s32.totalorder %v153, %v109
  %vm170 = vcmp.eq.s32.totalorder %v156, %v109
  %vm171 = vcmp.eq.s32.totalorder %v159, %v109
  %vm172 = vcmp.eq.s32.totalorder %v162, %v109
  %vm173 = vcmp.eq.s32.totalorder %v165, %v109
  %vm174 = vmor %vm134, %vm166
  %vm175 = vmor %vm135, %vm167
  %vm176 = vmor %vm136, %vm168
  %vm177 = vmor %vm137, %vm169
  %vm178 = vmor %vm138, %vm170
  %vm179 = vmor %vm139, %vm171
  %vm180 = vmor %vm140, %vm172
  %vm181 = vmor %vm141, %vm173
  %v182 = vsel %vm174, 1, 0
  %v183 = vsel %vm175, 1, 0
  %v184 = vsel %vm176, 1, 0
  %v185 = vsel %vm177, 1, 0
  %v186 = vsel %vm178, 1, 0
  %v187 = vsel %vm179, 1, 0
  %v188 = vsel %vm180, 1, 0
  %v189 = vsel %vm181, 1, 0
  %v190 = vcvt.s32.f32 %v182
  %v191 = vcvt.s32.f32 %v183
  %v192 = vcvt.s32.f32 %v184
  %v193 = vcvt.s32.f32 %v185
  %v194 = vcvt.s32.f32 %v186
  %v195 = vcvt.s32.f32 %v187
  %v196 = vcvt.s32.f32 %v188
  %v197 = vcvt.s32.f32 %v189
  %v198 = vld [vmem:[%s1] sm:$0xff]
  %v199 = vld [vmem:[%s1 + $0x8] sm:$0xff]
  %v200 = vld [vmem:[%s1 + $0x10] sm:$0xff]
  %v201 = vld [vmem:[%s1 + $0x18] sm:$0xff]
  %v202 = vld [vmem:[%s1 + $0x20] sm:$0xff]
  %v203 = vld [vmem:[%s1 + $0x28] sm:$0xff]
  %v204 = vld [vmem:[%s1 + $0x30] sm:$0xff]
  %v205 = vld [vmem:[%s1 + $0x38] sm:$0xff]
  %v206 = vld [vmem:[%s1 + $0x40] sm:$0xff]
  %v207 = vld [vmem:[%s1 + $0x48] sm:$0xff]
  %v208 = vld [vmem:[%s1 + $0x50] sm:$0xff]
  %v209 = vld [vmem:[%s1 + $0x58] sm:$0xff]
  %v210 = vld [vmem:[%s1 + $0x60] sm:$0xff]
  %v211 = vld [vmem:[%s1 + $0x68] sm:$0xff]
  %v212 = vld [vmem:[%s1 + $0x70] sm:$0xff]
  %v213 = vld [vmem:[%s1 + $0x78] sm:$0xff]
  %v214 = vld [vmem:[%s1 + $0x80] sm:$0xff]
  %v215 = vld [vmem:[%s1 + $0x88] sm:$0xff]
  %v216 = vld [vmem:[%s1 + $0x90] sm:$0xff]
  %v217 = vld [vmem:[%s1 + $0x98] sm:$0xff]
  %v218 = vld [vmem:[%s1 + $0xa0] sm:$0xff]
  %v219 = vld [vmem:[%s1 + $0xa8] sm:$0xff]
  %v220 = vld [vmem:[%s1 + $0xb0] sm:$0xff]
  %v221 = vld [vmem:[%s1 + $0xb8] sm:$0xff]
  %v222 = vld [vmem:[%s1 + $0xc0] sm:$0xff]
  %v223 = vld [vmem:[%s1 + $0xc8] sm:$0xff]
  %v224 = vld [vmem:[%s1 + $0xd0] sm:$0xff]
  %v225 = vld [vmem:[%s1 + $0xd8] sm:$0xff]
  %v226 = vld [vmem:[%s1 + $0xe0] sm:$0xff]
  %v227 = vld [vmem:[%s1 + $0xe8] sm:$0xff]
  %v228 = vld [vmem:[%s1 + $0xf0] sm:$0xff]
  %v229 = vld [vmem:[%s1 + $0xf8] sm:$0xff]
  %230 = vmatprep.subr.mxu0 0.0
  %231 = vmatpush1.msra.mxu0 %v198
  %232 = vmatprep.subr.mxu0 0.0
  %233 = vmatpush1.msra.mxu0 %v199
  %234 = vmatprep.subr.mxu0 0.0
  %235 = vmatpush1.msra.mxu0 %v200
  %236 = vmatprep.subr.mxu0 0.0
  %237 = vmatpush1.msra.mxu0 %v201
  %238 = vmatprep.subr.mxu0 0.0
  %239 = vmatpush1.msra.mxu0 %v202
  %240 = vmatprep.subr.mxu0 0.0
  %241 = vmatpush1.msra.mxu0 %v203
  %242 = vmatprep.subr.mxu0 0.0
  %243 = vmatpush1.msra.mxu0 %v204
  %244 = vmatprep.subr.mxu0 0.0
  %245 = vmatpush1.msra.mxu0 %v205
  %246 = vmatprep.subr.mxu0 0.0
  %247 = vmatpush1.msra.mxu0 %v206
  %248 = vmatprep.subr.mxu0 0.0
  %249 = vmatpush1.msra.mxu0 %v207
  %250 = vmatprep.subr.mxu0 0.0
  %251 = vmatpush1.msra.mxu0 %v208
  %252 = vmatprep.subr.mxu0 0.0
  %253 = vmatpush1.msra.mxu0 %v209
  %254 = vmatprep.subr.mxu0 0.0
  %255 = vmatpush1.msra.mxu0 %v210
  %256 = vmatprep.subr.mxu0 0.0
  %257 = vmatpush1.msra.mxu0 %v211
  %258 = vmatprep.subr.mxu0 0.0
  %259 = vmatpush1.msra.mxu0 %v212
  %260 = vmatprep.subr.mxu0 0.0
  %261 = vmatpush1.msra.mxu0 %v213
  %262 = vmatprep.subr.mxu0 0.0
  %263 = vmatpush1.msra.mxu0 %v214
  %264 = vmatprep.subr.mxu0 0.0
  %265 = vmatpush1.msra.mxu0 %v215
  %266 = vmatprep.subr.mxu0 0.0
  %267 = vmatpush1.msra.mxu0 %v216
  %268 = vmatprep.subr.mxu0 0.0
  %269 = vmatpush1.msra.mxu0 %v217
  %270 = vmatprep.subr.mxu0 0.0
  %271 = vmatpush1.msra.mxu0 %v218
  %272 = vmatprep.subr.mxu0 0.0
  %273 = vmatpush1.msra.mxu0 %v219
  %274 = vmatprep.subr.mxu0 0.0
  %275 = vmatpush1.msra.mxu0 %v220
  %276 = vmatprep.subr.mxu0 0.0
  %277 = vmatpush1.msra.mxu0 %v221
  %278 = vmatprep.subr.mxu0 0.0
  %279 = vmatpush1.msra.mxu0 %v222
  %280 = vmatprep.subr.mxu0 0.0
  %281 = vmatpush1.msra.mxu0 %v223
  %282 = vmatprep.subr.mxu0 0.0
  %283 = vmatpush1.msra.mxu0 %v224
  %284 = vmatprep.subr.mxu0 0.0
  %285 = vmatpush1.msra.mxu0 %v225
  %286 = vmatprep.subr.mxu0 0.0
  %287 = vmatpush1.msra.mxu0 %v226
  %288 = vmatprep.subr.mxu0 0.0
  %289 = vmatpush1.msra.mxu0 %v227
  %290 = vmatprep.subr.mxu0 0.0
  %291 = vmatpush1.msra.mxu0 %v228
  %292 = vmatprep.subr.mxu0 0.0
  %293 = vmatpush1.msra.mxu0 %v229
  %294 = vmatprep.mubr.f32.mxu0 %v190
  %295 = vmatmul.mubr.f32.gmra.mrb[0].mxu0 %v101
  %v296 = vpop.f32.mrb[0].mxu0
  %v297 = vadd.f32 0.0, %v296
  %v298 = vpop.f32.mrb[0].mxu0
  %299 = vmatprep.mubr.f32.mxu0 %v191
  %300 = vmatmul.mubr.f32.gmra.mrb[0].mxu0 %v102
  %v301 = vpop.f32.mrb[0].mxu0
  %v302 = vadd.f32 0.0, %v301
  %v303 = vpop.f32.mrb[0].mxu0
  %304 = vmatprep.mubr.f32.mxu0 %v192
  %305 = vmatmul.mubr.f32.gmra.mrb[0].mxu0 %v103
  %v306 = vpop.f32.mrb[0].mxu0
  %v307 = vadd.f32 0.0, %v306
  %v308 = vpop.f32.mrb[0].mxu0
  %309 = vmatprep.mubr.f32.mxu0 %v193
  %310 = vmatmul.mubr.f32.gmra.mrb[0].mxu0 %v104
  %v311 = vpop.f32.mrb[0].mxu0
  %v312 = vadd.f32 0.0, %v311
  %v313 = vpop.f32.mrb[0].mxu0
  %314 = vmatprep.mubr.f32.mxu0 %v194
  %315 = vmatmul.mubr.f32.gmra.mrb[0].mxu0 %v105
  %v316 = vpop.f32.mrb[0].mxu0
  %v317 = vadd.f32 0.0, %v316
  %v318 = vpop.f32.mrb[0].mxu0
  %319 = vmatprep.mubr.f32.mxu0 %v195
  %320 = vmatmul.mubr.f32.gmra.mrb[0].mxu0 %v106
  %v321 = vpop.f32.mrb[0].mxu0
  %v322 = vadd.f32 0.0, %v321
  %v323 = vpop.f32.mrb[0].mxu0
  %324 = vmatprep.mubr.f32.mxu0 %v196
  %325 = vmatmul.mubr.f32.gmra.mrb[0].mxu0 %v107
  %v326 = vpop.f32.mrb[0].mxu0
  %v327 = vadd.f32 0.0, %v326
  %v328 = vpop.f32.mrb[0].mxu0
  %329 = vmatprep.mubr.f32.mxu0 %v197
  %330 = vmatmul.mubr.f32.gmra.mrb[0].mxu0 %v108
  %v331 = vpop.f32.mrb[0].mxu0
  %v332 = vadd.f32 0.0, %v331
  %v333 = vpop.f32.mrb[0].mxu0
  %334 = vdwg.mxu0
  %335 = vst [vmem:[%s2] sm:$0xff] %v297
  %336 = vst [vmem:[%s2 + $0x8] sm:$0xff] %v302
  %337 = vst [vmem:[%s2 + $0x10] sm:$0xff] %v307
  %338 = vst [vmem:[%s2 + $0x18] sm:$0xff] %v312
  %339 = vst [vmem:[%s2 + $0x20] sm:$0xff] %v317
  %340 = vst [vmem:[%s2 + $0x28] sm:$0xff] %v322
  %341 = vst [vmem:[%s2 + $0x30] sm:$0xff] %v327
  %342 = vst [vmem:[%s2 + $0x38] sm:$0xff] %v332
  // Predicated region
  $region10: #{glyph_embedding_forward.1} parent=0 // pred_check
    _
  $region11: #{glyph_embedding_forward.1} parent=0 // pred_check_branch
    %344 = sbr.rel (0) target = $region13
  $region12: #{glyph_embedding_forward.1} parent=0 // pred_region
    _
  $region13: #{glyph_embedding_forward.1} parent=0 // pred_fallthru
    _
  // Predicated region
  $region14: #{glyph_embedding_forward.1} parent=0 // pred_check
    _
  $region15: #{glyph_embedding_forward.1} parent=0 // pred_check_branch
    %346 = sbr.rel (0) target = $region17
  $region16: #{glyph_embedding_forward.1} parent=0 // pred_region
    _
  $region17: #{glyph_embedding_forward.1} parent=0 // pred_fallthru
    _

</llo_original>
